<compile_context>
chip_gen: v5e
topology: v5e:2x2
jax: 0.10.0
libtpu: 0.0.40
codegen_flags: <defaults>
</compile_context>

<pallas_src>
import functools

import jax
import jax.numpy as jnp
from jax import lax
from jax.experimental import pallas as pl
from jax.experimental.pallas import tpu as pltpu


def _channel_att_kernel(x_ref, wab_ref, bab_ref, wc_ref, bc_ref, o_ref,
                        s_acc_ref, *, C, L_TILE, n_tiles, inv_l):
    phase = pl.program_id(1)
    cdt = x_ref.dtype                       # native compute dtype for MXU operands

    @pl.when(phase == 0)
    def _accumulate_gram():
        s_acc_ref[...] = jnp.zeros_like(s_acc_ref)
        wab = wab_ref[...]                                             # (2C, C)
        bab = jnp.broadcast_to(bab_ref[...].astype(jnp.float32),
                               (2 * C, L_TILE))                        # hoisted

        def body(i, carry):
            start = pl.multiple_of(i * L_TILE, L_TILE)
            x_t = x_ref[0, :, pl.ds(start, L_TILE)]                    # (C, Lt)
            ab = jnp.dot(wab, x_t,
                         preferred_element_type=jnp.float32) + bab     # (2C, Lt)
            a_t = ab[:C].astype(cdt)
            b_t = ab[C:].astype(cdt)
            # S^T += B_tile @ A_tile^T  (lane-axis contraction; per-tile
            # transpose of a_t rides the otherwise-idle XLU slot).
            s_acc_ref[...] += lax.dot_general(
                b_t, a_t, (((1,), (1,)), ((), ())),
                preferred_element_type=jnp.float32)
            return carry

        lax.fori_loop(0, n_tiles, body, 0, unroll=True)

    @pl.when(phase == 1)
    def _attend_and_project():
        # softmax over the last axis of S^T == softmax(dim=-2) of S.
        s_t = s_acc_ref[...] * inv_l
        e = jnp.exp(s_t - jnp.max(s_t, axis=-1, keepdims=True))
        inv_sum = pl.reciprocal(jnp.sum(e, axis=-1, keepdims=True), approx=True)
        att_t = (e * inv_sum).astype(cdt)                              # = att_c^T
        wc = wc_ref[...]                                               # (C, C)
        bc = jnp.broadcast_to(bc_ref[...].astype(jnp.float32),
                              (C, L_TILE))                             # hoisted

        def body(i, carry):
            start = pl.multiple_of(i * L_TILE, L_TILE)
            x_t = x_ref[0, :, pl.ds(start, L_TILE)]                    # (C, Lt)
            # (X^T @ att_c)^T == att_c^T @ X
            z_t = jnp.dot(att_t, x_t,
                          preferred_element_type=jnp.float32).astype(cdt)
            out_t = jnp.dot(wc, z_t, preferred_element_type=jnp.float32) + bc
            o_ref[0, :, pl.ds(start, L_TILE)] = jnp.maximum(out_t, 0.0).astype(
                o_ref.dtype)
            return carry

        lax.fori_loop(0, n_tiles, body, 0, unroll=True)


def channel_att_me(x, wa, ba, wb, bb, wc, bc):
    """Forward pass of Channel_Att_me. x: (N, C, T, V); w*: (C, C); b*: (C,)."""
    N, C, T, V = x.shape
    L = T * V
    xf = x.reshape(N, C, L)                       # contiguous view, no copy

    # Stack conv_a / conv_b so the first projection is one MXU call per tile.
    wab = jnp.concatenate([wa, wb], axis=0)                   # (2C, C)
    bab = jnp.concatenate([ba, bb], axis=0).reshape(2 * C, 1)
    bc2 = bc.reshape(C, 1)

    # In-kernel L tile (lane-dense). x stays fully resident per batch; only the
    # (C, L_TILE) working tiles + a (C, C) S^T scratch are live at any time.
    if L % 128 == 0:
        L_TILE = next(t for t in (512, 256, 128) if L % t == 0)
    else:
        # TODO(synk): pad L up to a lane multiple (and mask the bias-tainted
        # padded columns of A/B) so output stores are unmasked full-lane vst.
        L_TILE = L
    n_tiles = L // L_TILE

    # Explicit VMEM budget: double-buffered x/out blocks + weights + scratch.
    isz = x.dtype.itemsize
    est = (4 * C * L * isz                         # x + out blocks, 2-buffered
           + 4 * 3 * C * C * wa.dtype.itemsize     # stacked + conv_c weights
           + 4 * 3 * C * 4                         # biases
           + 2 * C * C * 4                         # S^T scratch + softmax temps
           + 8 * C * L_TILE * 4                    # per-tile working values
           + (2 << 20))                            # headroom
    try:
        vmem_cap = pltpu.get_tpu_info().vmem_capacity_bytes
    except Exception:
        vmem_cap = 64 << 20                        # v7x per-core VMEM
    vmem_limit = int(min(max(est, 32 << 20), vmem_cap * 3 // 4))

    kernel = functools.partial(_channel_att_kernel, C=C, L_TILE=L_TILE,
                               n_tiles=n_tiles, inv_l=1.0 / L)

    x_spec = pl.BlockSpec((1, C, L), lambda n, p: (n, 0, 0))

    out = pl.pallas_call(
        kernel,
        out_shape=jax.ShapeDtypeStruct((N, C, L), x.dtype),
        grid_spec=pltpu.PrefetchScalarGridSpec(
            num_scalar_prefetch=0,
            grid=(N, 2),                           # (batch, phase)
            in_specs=[
                x_spec,
                pl.BlockSpec((2 * C, C), lambda n, p: (0, 0)),
                pl.BlockSpec((2 * C, 1), lambda n, p: (0, 0)),
                pl.BlockSpec((C, C), lambda n, p: (0, 0)),
                pl.BlockSpec((C, 1), lambda n, p: (0, 0)),
            ],
            out_specs=x_spec,
            scratch_shapes=[pltpu.VMEM((C, C), jnp.float32)],
        ),
        compiler_params=pltpu.CompilerParams(
            dimension_semantics=("parallel", "arbitrary"),
            vmem_limit_bytes=vmem_limit,
        ),
    )(xf, wab, bab, wc, bc2)

    return out.reshape(N, C, T, V)


def channel_att_ref(x, wa, ba, wb, bb, wc, bc):
    """Pure-JAX reference matching the PyTorch module."""
    N, C, T, V = x.shape
    L = T * V
    xf = x.reshape(N, C, L).astype(jnp.float32)
    a = jnp.einsum('oc,ncl->nol', wa, xf) + ba[None, :, None]
    b = jnp.einsum('oc,ncl->nol', wb, xf) + bb[None, :, None]
    s = jnp.einsum('ncl,ndl->ncd', a, b) / L
    att = jax.nn.softmax(s, axis=1)                      # dim=-2 of (N, C, C)
    z = jnp.einsum('ncd,ncl->ndl', att, xf)              # att^T @ X per batch
    out = jnp.einsum('oc,ncl->nol', wc, z) + bc[None, :, None]
    return jnp.maximum(out, 0.0).reshape(N, C, T, V).astype(x.dtype)


if __name__ == "__main__":
    key = jax.random.PRNGKey(0)
    N, C, T, V = 2, 4, 16, 16
    kx, ka, kb, kc, kba, kbb, kbc = jax.random.split(key, 7)

    x = jax.random.normal(kx, (N, C, T, V), dtype=jnp.float32)
    scale = 1.0 / (C ** 0.5)
    wa = jax.random.normal(ka, (C, C), dtype=jnp.float32) * scale
    wb = jax.random.normal(kb, (C, C), dtype=jnp.float32) * scale
    wc = jax.random.normal(kc, (C, C), dtype=jnp.float32) * scale
    ba = jax.random.normal(kba, (C,), dtype=jnp.float32) * 0.1
    bb = jax.random.normal(kbb, (C,), dtype=jnp.float32) * 0.1
    bc = jax.random.normal(kbc, (C,), dtype=jnp.float32) * 0.1

    # f32 path
    out = jax.block_until_ready(channel_att_me(x, wa, ba, wb, bb, wc, bc))
    ref = channel_att_ref(x, wa, ba, wb, bb, wc, bc)
    assert out.shape == x.shape and out.dtype == x.dtype
    # pl.reciprocal(approx=True) in the softmax denominator perturbs the result
    # by ~1e-3 relative (per perf review); exact mode reproduces <=1e-5.
    err = float(jnp.max(jnp.abs(out - ref)))
    assert jnp.allclose(out, ref, atol=5e-3, rtol=5e-3), err

    # bf16 path: matmul operands stay bf16 (full-rate MXU), accumulation in f32.
    x16 = x.astype(jnp.bfloat16)
    p16 = [p.astype(jnp.bfloat16) for p in (wa, ba, wb, bb, wc, bc)]
    out16 = jax.block_until_ready(channel_att_me(x16, *p16))
    ref16 = channel_att_ref(x16, *p16)
    assert out16.shape == x.shape and out16.dtype == jnp.bfloat16
    err16 = float(jnp.max(jnp.abs(out16.astype(jnp.float32)
                                  - ref16.astype(jnp.float32))))
    assert jnp.allclose(out16.astype(jnp.float32), ref16.astype(jnp.float32),
                        atol=5e-2, rtol=5e-2), err16

    print("KERNEL_OK")
</pallas_src>

<mosaic_0001>
module attributes {stable_mosaic.version = 11 : i64} {
  func.func @_channel_att_kernel(%arg0: i32, %arg1: i32, %arg2: memref<1x4x256xf32, #tpu.memory_space<vmem>>, %arg3: memref<8x4xf32, #tpu.memory_space<vmem>>, %arg4: memref<8x1xf32, #tpu.memory_space<vmem>>, %arg5: memref<4x4xf32, #tpu.memory_space<vmem>>, %arg6: memref<4x1xf32, #tpu.memory_space<vmem>>, %arg7: memref<1x4x256xf32, #tpu.memory_space<vmem>>, %arg8: memref<4x4xf32, #tpu.memory_space<vmem>>) attributes {dimension_semantics = [#tpu.dimension_semantics<parallel>, #tpu.dimension_semantics<arbitrary>], iteration_bounds = array<i64: 2, 2>, scalar_prefetch = 0 : i64, scratch_operands = 1 : i64, tpu.core_type = #tpu.core_type<tc>, window_params = [{transform_indices = @transform_0, window_bounds = array<i64: 1, 4, 256>}, {pipeline_mode = #tpu.pipeline_mode<synchronous>, transform_indices = @transform_1, window_bounds = array<i64: 8, 4>}, {pipeline_mode = #tpu.pipeline_mode<synchronous>, transform_indices = @transform_2, window_bounds = array<i64: 8, 1>}, {pipeline_mode = #tpu.pipeline_mode<synchronous>, transform_indices = @transform_3, window_bounds = array<i64: 4, 4>}, {pipeline_mode = #tpu.pipeline_mode<synchronous>, transform_indices = @transform_4, window_bounds = array<i64: 4, 1>}, {transform_indices = @transform_5, window_bounds = array<i64: 1, 4, 256>}]} {
    %c0_i32 = arith.constant 0 : i32
    %0 = arith.cmpi eq, %arg1, %c0_i32 : i32
    %1 = arith.extui %0 : i1 to i32
    %c0_i32_0 = arith.constant 0 : i32
    %2 = arith.cmpi ne, %1, %c0_i32_0 : i32
    scf.if %2 {
      %cst = arith.constant 0.000000e+00 : f32
      %6 = vector.broadcast %cst : f32 to vector<4x4xf32>
      %c0 = arith.constant 0 : index
      %c0_2 = arith.constant 0 : index
      %7 = vector.load %arg8[%c0, %c0_2] : memref<4x4xf32, #tpu.memory_space<vmem>>, vector<4x4xf32>
      tpu.vector_store %arg8[%c0, %c0_2], %6 {strides = array<i32>} : memref<4x4xf32, #tpu.memory_space<vmem>>, vector<4x4xf32>,
      %c0_3 = arith.constant 0 : index
      %c0_4 = arith.constant 0 : index
      %8 = vector.load %arg3[%c0_3, %c0_4] : memref<8x4xf32, #tpu.memory_space<vmem>>, vector<8x4xf32>
      %c0_5 = arith.constant 0 : index
      %c0_6 = arith.constant 0 : index
      %9 = vector.load %arg4[%c0_5, %c0_6] : memref<8x1xf32, #tpu.memory_space<vmem>>, vector<8x1xf32>
      %10 = vector.shape_cast %9 : vector<8x1xf32> to vector<8x1xf32>
      %11 = vector.broadcast %10 : vector<8x1xf32> to vector<8x256xf32>
      %c0_i32_7 = arith.constant 0 : i32
      %c256_i32 = arith.constant 256 : i32
      %12 = arith.muli %c0_i32_7, %c256_i32 : i32
      %13 = tpu.assume_multiple %12, 256 : i32
      %c0_8 = arith.constant 0 : index
      %c0_9 = arith.constant 0 : index
      %14 = arith.index_cast %13 : i32 to index
      %15 = vector.load %arg2[%c0_8, %c0_9, %14] : memref<1x4x256xf32, #tpu.memory_space<vmem>>, vector<1x4x256xf32>
      %16 = vector.shape_cast %15 : vector<1x4x256xf32> to vector<4x256xf32>
      %cst_10 = arith.constant dense<0.000000e+00> : vector<8x256xf32>
      %17 = tpu.matmul %8, %16, %cst_10 {dimension_numbers = #tpu.dot_dimension_numbers<[1], [0], [0], [1], [0, 0, 1, 1], [], []>} : vector<8x4xf32>, vector<4x256xf32>, vector<8x256xf32> -> vector<8x256xf32>
      %18 = arith.addf %17, %11 : vector<8x256xf32>
      %19 = vector.extract_strided_slice %18 {offsets = [0, 0], sizes = [4, 256], strides = [1, 1]} : vector<8x256xf32> to vector<4x256xf32>
      %20 = vector.extract_strided_slice %18 {offsets = [4, 0], sizes = [4, 256], strides = [1, 1]} : vector<8x256xf32> to vector<4x256xf32>
      %c0_11 = arith.constant 0 : index
      %c0_12 = arith.constant 0 : index
      %21 = vector.load %arg8[%c0_11, %c0_12] : memref<4x4xf32, #tpu.memory_space<vmem>>, vector<4x4xf32>
      %cst_13 = arith.constant dense<0.000000e+00> : vector<4x4xf32>
      %22 = tpu.matmul %20, %19, %cst_13 {dimension_numbers = #tpu.dot_dimension_numbers<[1], [1], [0], [0], [0, 0, 1, 0], [], []>} : vector<4x256xf32>, vector<4x256xf32>, vector<4x4xf32> -> vector<4x4xf32>
      %23 = arith.addf %21, %22 : vector<4x4xf32>
      %c0_14 = arith.constant 0 : index
      %c0_15 = arith.constant 0 : index
      %24 = vector.load %arg8[%c0_14, %c0_15] : memref<4x4xf32, #tpu.memory_space<vmem>>, vector<4x4xf32>
      tpu.vector_store %arg8[%c0_14, %c0_15], %23 {strides = array<i32>} : memref<4x4xf32, #tpu.memory_space<vmem>>, vector<4x4xf32>,
      %c1_i32_16 = arith.constant 1 : i32
    } else {
    }
    %c1_i32 = arith.constant 1 : i32
    %3 = arith.cmpi eq, %arg1, %c1_i32 : i32
    %4 = arith.extui %3 : i1 to i32
    %c0_i32_1 = arith.constant 0 : i32
    %5 = arith.cmpi ne, %4, %c0_i32_1 : i32
    scf.if %5 {
      %c0 = arith.constant 0 : index
      %c0_2 = arith.constant 0 : index
      %6 = vector.load %arg8[%c0, %c0_2] : memref<4x4xf32, #tpu.memory_space<vmem>>, vector<4x4xf32>
      %cst = arith.constant 3.906250e-03 : f32
      %7 = vector.broadcast %cst : f32 to vector<4x4xf32>
      %8 = arith.mulf %6, %7 : vector<4x4xf32>
      %cst_3 = arith.constant dense<0xFF800000> : vector<4xf32>
      %9 = vector.multi_reduction <maximumf>, %8, %cst_3 [1] : vector<4x4xf32> to vector<4xf32>
      %10 = vector.shape_cast %9 : vector<4xf32> to vector<4x1xf32>
      %11 = vector.broadcast %10 : vector<4x1xf32> to vector<4x4xf32>
      %12 = arith.subf %8, %11 : vector<4x4xf32>
      %13 = math.exp %12 : vector<4x4xf32>
      %cst_4 = arith.constant dense<0.000000e+00> : vector<4xf32>
      %14 = vector.multi_reduction <add>, %13, %cst_4 [1] : vector<4x4xf32> to vector<4xf32>
      %15 = vector.shape_cast %14 : vector<4xf32> to vector<4x1xf32>
      %16 = tpu.reciprocal %15 {approx = true} : vector<4x1xf32> -> vector<4x1xf32>
      %17 = vector.broadcast %16 : vector<4x1xf32> to vector<4x4xf32>
      %18 = arith.mulf %13, %17 : vector<4x4xf32>
      %c0_5 = arith.constant 0 : index
      %c0_6 = arith.constant 0 : index
      %19 = vector.load %arg5[%c0_5, %c0_6] : memref<4x4xf32, #tpu.memory_space<vmem>>, vector<4x4xf32>
      %c0_7 = arith.constant 0 : index
      %c0_8 = arith.constant 0 : index
      %20 = vector.load %arg6[%c0_7, %c0_8] : memref<4x1xf32, #tpu.memory_space<vmem>>, vector<4x1xf32>
      %21 = vector.shape_cast %20 : vector<4x1xf32> to vector<4x1xf32>
      %22 = vector.broadcast %21 : vector<4x1xf32> to vector<4x256xf32>
      %c0_i32_9 = arith.constant 0 : i32
      %c256_i32 = arith.constant 256 : i32
      %23 = arith.muli %c0_i32_9, %c256_i32 : i32
      %24 = tpu.assume_multiple %23, 256 : i32
      %c0_10 = arith.constant 0 : index
      %c0_11 = arith.constant 0 : index
      %25 = arith.index_cast %24 : i32 to index
      %26 = vector.load %arg2[%c0_10, %c0_11, %25] : memref<1x4x256xf32, #tpu.memory_space<vmem>>, vector<1x4x256xf32>
      %27 = vector.shape_cast %26 : vector<1x4x256xf32> to vector<4x256xf32>
      %cst_12 = arith.constant dense<0.000000e+00> : vector<4x256xf32>
      %28 = tpu.matmul %18, %27, %cst_12 {dimension_numbers = #tpu.dot_dimension_numbers<[1], [0], [0], [1], [0, 0, 1, 1], [], []>} : vector<4x4xf32>, vector<4x256xf32>, vector<4x256xf32> -> vector<4x256xf32>
      %cst_13 = arith.constant dense<0.000000e+00> : vector<4x256xf32>
      %29 = tpu.matmul %19, %28, %cst_13 {dimension_numbers = #tpu.dot_dimension_numbers<[1], [0], [0], [1], [0, 0, 1, 1], [], []>} : vector<4x4xf32>, vector<4x256xf32>, vector<4x256xf32> -> vector<4x256xf32>
      %30 = arith.addf %29, %22 : vector<4x256xf32>
      %cst_14 = arith.constant 0.000000e+00 : f32
      %31 = vector.broadcast %cst_14 : f32 to vector<4x256xf32>
      %32 = arith.maximumf %30, %31 : vector<4x256xf32>
      %c0_15 = arith.constant 0 : index
      %c0_16 = arith.constant 0 : index
      %33 = arith.index_cast %24 : i32 to index
      %34 = vector.load %arg7[%c0_15, %c0_16, %33] : memref<1x4x256xf32, #tpu.memory_space<vmem>>, vector<1x4x256xf32>
      %35 = vector.shape_cast %34 : vector<1x4x256xf32> to vector<4x256xf32>
      %36 = vector.shape_cast %32 : vector<4x256xf32> to vector<1x4x256xf32>
      tpu.vector_store %arg7[%c0_15, %c0_16, %33], %36 {strides = array<i32>} : memref<1x4x256xf32, #tpu.memory_space<vmem>>, vector<1x4x256xf32>,
      %c1_i32_17 = arith.constant 1 : i32
    } else {
    }
    return
  }
  func.func @transform_0(%arg0: i32, %arg1: i32) -> (i32, i32, i32) {
    %c0_i32 = arith.constant 0 : i32
    %c0_i32_0 = arith.constant 0 : i32
    %c0_i32_1 = arith.constant 0 : i32
    return %arg0, %c0_i32, %c0_i32_0 : i32, i32, i32
  }
  func.func @transform_1(%arg0: i32, %arg1: i32) -> (i32, i32) {
    %c0_i32 = arith.constant 0 : i32
    %c0_i32_0 = arith.constant 0 : i32
    %c0_i32_1 = arith.constant 0 : i32
    return %c0_i32, %c0_i32_0 : i32, i32
  }
  func.func @transform_2(%arg0: i32, %arg1: i32) -> (i32, i32) {
    %c0_i32 = arith.constant 0 : i32
    %c0_i32_0 = arith.constant 0 : i32
    %c0_i32_1 = arith.constant 0 : i32
    return %c0_i32, %c0_i32_0 : i32, i32
  }
  func.func @transform_3(%arg0: i32, %arg1: i32) -> (i32, i32) {
    %c0_i32 = arith.constant 0 : i32
    %c0_i32_0 = arith.constant 0 : i32
    %c0_i32_1 = arith.constant 0 : i32
    return %c0_i32, %c0_i32_0 : i32, i32
  }
  func.func @transform_4(%arg0: i32, %arg1: i32) -> (i32, i32) {
    %c0_i32 = arith.constant 0 : i32
    %c0_i32_0 = arith.constant 0 : i32
    %c0_i32_1 = arith.constant 0 : i32
    return %c0_i32, %c0_i32_0 : i32, i32
  }
  func.func @transform_5(%arg0: i32, %arg1: i32) -> (i32, i32, i32) {
    %c0_i32 = arith.constant 0 : i32
    %c0_i32_0 = arith.constant 0 : i32
    %c0_i32_1 = arith.constant 0 : i32
    return %arg0, %c0_i32, %c0_i32_0 : i32, i32, i32
  }
}

</mosaic_0001>

<llo_original>
// kernel: tpu_custom_call.1
$region0: #{tpu_custom_call.1}
  #allocation0 [shape = 'u32[]', space=smem, size = 0x4, offset = 0x4, fixed_abs, tag = 'smem constant byte address 0x4 - core index']
  #allocation1 [shape = 'u32[72,128]{1,0:T(1,128)}', space=vmem, size = 0x9000, scoped, tag = 'internal scratch']
  #allocation2 [shape = 'f32[4,4]{1,0:T(4,128)}', space=vmem, size = 0x800, scoped, tag = 'scratch operand']
  %s0 = inlined_call_operand.vmem [shape: f32[2,4,256], index: 0, kind: input, shape index: {}]
  %s1 = inlined_call_operand.vmem [shape: f32[8,4], index: 1, kind: input, shape index: {}]
  %s2 = inlined_call_operand.vmem [shape: f32[8,1], index: 2, kind: input, shape index: {}]
  %s3 = inlined_call_operand.vmem [shape: f32[4,4], index: 3, kind: input, shape index: {}]
  %s4 = inlined_call_operand.vmem [shape: f32[4,1], index: 4, kind: input, shape index: {}]
  %s5 = inlined_call_operand.hbm [shape: f32[2,4,256], index: 5, kind: output, shape index: {}]
  %s6 = sld [smem:[#allocation0]]
  $region61: #{tpu_custom_call.1} parent=0
    _
  %s8 = ssub.s32 1, %s6
  %s9 = scalar_select 0, %s8, %s6
  $region1: #{tpu_custom_call.1} parent=0
    #allocation3 [shape = 'u8[8192]{0}', space=vmem, size = 0x2000, scoped, tag = 'output window, operand 0']
    #allocation4 [shape = 's32[2]{0}', space=sflag, size = 0x8, scoped, tag = 'scoped memory for tpu_custom_call.1']
    %10 = vsyncpa [#allocation4], 0
    %s11 = scalar_lea.sflag [#allocation4], 1
    %12 = vsyncpa %s11, 0
    loop: start=0, step=1, limit=6
    $region2: #{tpu_custom_call.1} parent=1 // loop_pre_header
      _
    $region3: #{tpu_custom_call.1} parent=1 // loop_header
      %s14 = sphi 0, %s18
      %p15 = scmp.ge.s32.totalorder %s14, 6
      %s21 = sphi 0, %s33
      %s22 = sphi 0, %s29
      %s23 = sphi 0, %s21
      %s24 = sphi 0, %s22
      %s25 = sphi 0, %s23
      %s26 = sphi 0, %s24
      %s36 = sphi 0, %s38
      %s39 = sphi 0, %s36
      %s40 = sphi 0, %s39
      %s56 = sphi 0, %s40
      %s60 = sphi 0, %s60
      %s62 = sphi 0, %s60
      %s63 = sphi 0, %s62
      %s77 = sphi 0, %s63
      %s81 = sphi 0, %s81
      %s83 = sphi 0, %s81
      %s84 = sphi 0, %s83
      %s98 = sphi 0, %s84
      %s102 = sphi 0, %s102
      %s104 = sphi 0, %s102
      %s105 = sphi 0, %s104
      %s119 = sphi 0, %s105
      %s123 = sphi 0, %s123
      %s125 = sphi 0, %s123
      %s126 = sphi 0, %s125
      %s140 = sphi 0, %s126
      %s146 = sphi 0, %s148
      %s149 = sphi 0, %s146
      %s150 = sphi 0, %s149
      %s166 = sphi 0, %s150
    $region4: #{tpu_custom_call.1} parent=1 // loop_header_branch
      %17 = sbr.rel (%p15) target = $region8
    $region5: #{tpu_custom_call.1} parent=1 // loop_body
      %s19 = ssub.s32 %s14, 1
      %s20 = ssub.s32 %s14, 2
      %s27 = sadd.s32 1, %s22
      %p28 = scmp.ge.s32.totalorder %s27, 2
      %s29 = scalar_select %p28, 0, %s27
      %s30 = sadd.s32 1, %s21
      %s31 = scalar_select %p28, %s30, %s21
      %p32 = scmp.ge.s32.totalorder %s31, 2
      %s33 = scalar_select %p32, 0, %s31
      %s34 = ssub.s32 %s21, %s33
      %p35 = scmp.eq.s32.totalorder %s34, 0
      %s37 = sadd.s32 %s36, 1
      %s38 = scalar_select %p35, %s36, %s37
      %p41 = pneg %p35
      %p42 = scmp.eq.s32.totalorder %s14, 3
      %p43 = por %p41, %p42
      %p44 = scmp.ne.s32.totalorder %s36, %s39
      %p45 = scmp.eq.s32.totalorder %s14, 0
      %p46 = por %p44, %p45
      %p47 = scmp.ne.s32.totalorder %s36, %s39
      %p48 = scmp.eq.s32.totalorder %s19, 3
      %p49 = por %p47, %p48
      %p50 = scmp.ne.s32.totalorder %s39, %s40
      %p51 = scmp.eq.s32.totalorder %s19, 0
      %p52 = por %p50, %p51
      %p53 = scmp.ne.s32.totalorder %s39, %s40
      %p54 = scmp.eq.s32.totalorder %s20, 3
      %p55 = por %p53, %p54
      %p57 = scmp.ne.s32.totalorder %s40, %s56
      %p58 = scmp.eq.s32.totalorder %s20, 0
      %p59 = por %p57, %p58
      %s61 = sadd.s32 %s60, 1
      %p64 = scmp.eq.s32.totalorder %s14, 3
      %p65 = scmp.ne.s32.totalorder %s60, %s62
      %p66 = scmp.eq.s32.totalorder %s14, 0
      %p67 = por %p65, %p66
      %p68 = scmp.ne.s32.totalorder %s60, %s62
      %p69 = scmp.eq.s32.totalorder %s19, 3
      %p70 = por %p68, %p69
      %p71 = scmp.ne.s32.totalorder %s62, %s63
      %p72 = scmp.eq.s32.totalorder %s19, 0
      %p73 = por %p71, %p72
      %p74 = scmp.ne.s32.totalorder %s62, %s63
      %p75 = scmp.eq.s32.totalorder %s20, 3
      %p76 = por %p74, %p75
      %p78 = scmp.ne.s32.totalorder %s63, %s77
      %p79 = scmp.eq.s32.totalorder %s20, 0
      %p80 = por %p78, %p79
      %s82 = sadd.s32 %s81, 1
      %p85 = scmp.eq.s32.totalorder %s14, 3
      %p86 = scmp.ne.s32.totalorder %s81, %s83
      %p87 = scmp.eq.s32.totalorder %s14, 0
      %p88 = por %p86, %p87
      %p89 = scmp.ne.s32.totalorder %s81, %s83
      %p90 = scmp.eq.s32.totalorder %s19, 3
      %p91 = por %p89, %p90
      %p92 = scmp.ne.s32.totalorder %s83, %s84
      %p93 = scmp.eq.s32.totalorder %s19, 0
      %p94 = por %p92, %p93
      %p95 = scmp.ne.s32.totalorder %s83, %s84
      %p96 = scmp.eq.s32.totalorder %s20, 3
      %p97 = por %p95, %p96
      %p99 = scmp.ne.s32.totalorder %s84, %s98
      %p100 = scmp.eq.s32.totalorder %s20, 0
      %p101 = por %p99, %p100
      %s103 = sadd.s32 %s102, 1
      %p106 = scmp.eq.s32.totalorder %s14, 3
      %p107 = scmp.ne.s32.totalorder %s102, %s104
      %p108 = scmp.eq.s32.totalorder %s14, 0
      %p109 = por %p107, %p108
      %p110 = scmp.ne.s32.totalorder %s102, %s104
      %p111 = scmp.eq.s32.totalorder %s19, 3
      %p112 = por %p110, %p111
      %p113 = scmp.ne.s32.totalorder %s104, %s105
      %p114 = scmp.eq.s32.totalorder %s19, 0
      %p115 = por %p113, %p114
      %p116 = scmp.ne.s32.totalorder %s104, %s105
      %p117 = scmp.eq.s32.totalorder %s20, 3
      %p118 = por %p116, %p117
      %p120 = scmp.ne.s32.totalorder %s105, %s119
      %p121 = scmp.eq.s32.totalorder %s20, 0
      %p122 = por %p120, %p121
      %s124 = sadd.s32 %s123, 1
      %p127 = scmp.eq.s32.totalorder %s14, 3
      %p128 = scmp.ne.s32.totalorder %s123, %s125
      %p129 = scmp.eq.s32.totalorder %s14, 0
      %p130 = por %p128, %p129
      %p131 = scmp.ne.s32.totalorder %s123, %s125
      %p132 = scmp.eq.s32.totalorder %s19, 3
      %p133 = por %p131, %p132
      %p134 = scmp.ne.s32.totalorder %s125, %s126
      %p135 = scmp.eq.s32.totalorder %s19, 0
      %p136 = por %p134, %p135
      %p137 = scmp.ne.s32.totalorder %s125, %s126
      %p138 = scmp.eq.s32.totalorder %s20, 3
      %p139 = por %p137, %p138
      %p141 = scmp.ne.s32.totalorder %s126, %s140
      %p142 = scmp.eq.s32.totalorder %s20, 0
      %p143 = por %p141, %p142
      %s144 = ssub.s32 %s21, %s33
      %p145 = scmp.eq.s32.totalorder %s144, 0
      %s147 = sadd.s32 %s146, 1
      %s148 = scalar_select %p145, %s146, %s147
      %p151 = pneg %p145
      %p152 = scmp.eq.s32.totalorder %s14, 3
      %p153 = por %p151, %p152
      %p154 = scmp.ne.s32.totalorder %s146, %s149
      %p155 = scmp.eq.s32.totalorder %s14, 0
      %p156 = por %p154, %p155
      %p157 = scmp.ne.s32.totalorder %s146, %s149
      %p158 = scmp.eq.s32.totalorder %s19, 3
      %p159 = por %p157, %p158
      %p160 = scmp.ne.s32.totalorder %s149, %s150
      %p161 = scmp.eq.s32.totalorder %s19, 0
      %p162 = por %p160, %p161
      %p163 = scmp.ne.s32.totalorder %s149, %s150
      %p164 = scmp.eq.s32.totalorder %s20, 3
      %p165 = por %p163, %p164
      %p167 = scmp.ne.s32.totalorder %s150, %s166
      %p168 = scmp.eq.s32.totalorder %s20, 0
      %p169 = por %p167, %p168
      %p170 = scmp.le.s32.totalorder 1, %s14
      %p171 = scmp.lt.s32.totalorder %s14, 5
      %p172 = pnand %p170, %p171
      %p173 = pneg %p172
      // Predicated region
      $region9: #{tpu_custom_call.1} parent=5 // pred_check
        _
      $region10: #{tpu_custom_call.1} parent=5 // pred_check_branch
        %175 = sbr.rel (%p172) target = $region12
      $region11: #{tpu_custom_call.1} parent=5 // pred_region
        %s176 = ssub.s32 %s14, 1
        // Predicated region
        $region13: #{tpu_custom_call.1} parent=11 // pred_check
          %p177 = pneg %p73
        $region14: #{tpu_custom_call.1} parent=11 // pred_check_branch
          %179 = sbr.rel (%p177) target = $region16
        $region15: #{tpu_custom_call.1} parent=11 // pred_region
          _
        $region16: #{tpu_custom_call.1} parent=11 // pred_fallthru
          _
        // Predicated region
        $region17: #{tpu_custom_call.1} parent=11 // pred_check
          %p180 = pneg %p94
        $region18: #{tpu_custom_call.1} parent=11 // pred_check_branch
          %182 = sbr.rel (%p180) target = $region20
        $region19: #{tpu_custom_call.1} parent=11 // pred_region
          _
        $region20: #{tpu_custom_call.1} parent=11 // pred_fallthru
          _
        // Predicated region
        $region21: #{tpu_custom_call.1} parent=11 // pred_check
          %p183 = pneg %p115
        $region22: #{tpu_custom_call.1} parent=11 // pred_check_branch
          %185 = sbr.rel (%p183) target = $region24
        $region23: #{tpu_custom_call.1} parent=11 // pred_region
          _
        $region24: #{tpu_custom_call.1} parent=11 // pred_fallthru
          _
        // Predicated region
        $region25: #{tpu_custom_call.1} parent=11 // pred_check
          %p186 = pneg %p136
        $region26: #{tpu_custom_call.1} parent=11 // pred_check_branch
          %188 = sbr.rel (%p186) target = $region28
        $region27: #{tpu_custom_call.1} parent=11 // pred_region
          _
        $region28: #{tpu_custom_call.1} parent=11 // pred_fallthru
          _
      $region12: #{tpu_custom_call.1} parent=5 // pred_fallthru
        _
      %p189 = scmp.lt.s32.totalorder %s14, 4
      // Predicated region
      $region29: #{tpu_custom_call.1} parent=5 // pred_check
        %p190 = pneg %p189
      $region30: #{tpu_custom_call.1} parent=5 // pred_check_branch
        %192 = sbr.rel (%p190) target = $region32
      $region31: #{tpu_custom_call.1} parent=5 // pred_region
        // Predicated region
        $region33: #{tpu_custom_call.1} parent=31 // pred_check
          %p193 = pneg %p46
        $region34: #{tpu_custom_call.1} parent=31 // pred_check_branch
          %195 = sbr.rel (%p193) target = $region36
        $region35: #{tpu_custom_call.1} parent=31 // pred_region
          %p196 = scmp.lt.s32.totalorder %s21, 1
          %s197 = scalar_select %p196, %s21, 1
          %s198 = smul.addr %s197, 2
          %s199 = smul.addr %s198, 4
          %s200 = scalar_lea.vmem %s0, %s199
        $region36: #{tpu_custom_call.1} parent=31 // pred_fallthru
          _
      $region32: #{tpu_custom_call.1} parent=5 // pred_fallthru
        _
      %p201 = scmp.le.s32.totalorder 1, %s14
      %p202 = scmp.lt.s32.totalorder %s14, 5
      %p203 = pnand %p201, %p202
      %p204 = pneg %p203
      // Predicated region
      $region37: #{tpu_custom_call.1} parent=5 // pred_check
        _
      $region38: #{tpu_custom_call.1} parent=5 // pred_check_branch
        %206 = sbr.rel (%p203) target = $region40
      $region39: #{tpu_custom_call.1} parent=5 // pred_region
        %s207 = ssub.s32 %s14, 1
        %p208 = scmp.lt.s32.totalorder %s23, 1
        %s209 = scalar_select %p208, %s23, 1
        %s210 = smul.addr %s209, 2
        %s211 = smul.addr %s210, 4
        %s212 = scalar_lea.vmem %s0, %s211
        %p213 = pneg %p52
        %p214 = pneg %p49
        %p215 = pneg %p73
        %p216 = pneg %p70
        %p217 = pneg %p94
        %p218 = pneg %p91
        %p219 = pneg %p115
        %p220 = pneg %p112
        %p221 = pneg %p136
        %p222 = pneg %p133
        %p223 = pneg %p162
        %p224 = pneg %p159
        %s225 = sand.u32 %s149, 1
        %s226 = scalar_lea.sflag [#allocation4], %s225
        %s227 = sand.u32 %s149, 1
        %s228 = smul.addr %s227, 8
        %s229 = scalar_lea.vmem [#allocation3], %s228
        %p230 = scmp.lt.s32.totalorder %s23, 1
        %s231 = scalar_select %p230, %s23, 1
        %s232 = smul.addr %s231, 2
        %s233 = smul.addr %s232, 4
        %s234 = scalar_lea.vmem %s0, %s233
        %p235 = scmp.eq.s32.totalorder %s24, 0
        // Predicated region
        $region41: #{tpu_custom_call.1} parent=39 // pred_check
          %p236 = pneg %p235
        $region42: #{tpu_custom_call.1} parent=39 // pred_check_branch
          %238 = sbr.rel (%p236) target = $region44
        $region43: #{tpu_custom_call.1} parent=39 // pred_region
          %vm239 = vcmask 27648
          %240 = vst.msk [vmem:[#allocation2] sm:$0xf] %vm239, 0.0
          %v241 = vld [vmem:[%s1] sm:$0xff]
          %v242 = vld [vmem:[%s2] sm:$0xff]
          %244 = vset.pattern.permute.xlu0 0
          %245 = vperm.xlu0 %244, %v242
          %v246 = vpop.permute.xlu0 %245
          %v248 = vld [vmem:[%s234] sm:$0xff]
          %250 = vst [vmem:[#allocation1] ss:$2 sm:$0xff] %v248
          %v251 = vld.sshfl [vmem:[#allocation1] sm:$0xff pattern:$0x75316420]
          %v252 = vld.sshfl [vmem:[#allocation1 + $0x8] sm:$0xff pattern:$0x75316420]
          %vm253 = vcmask 31744
          %v255 = vsel %vm253, %v241, 0
          %vm257 = vcmask 1043456
          %v258 = vsel %vm257, %v251, 0
          %v260 = vsel %vm257, %v252, 0
          %262 = vmatpush.msra.mxu0 0.0
          %263 = vmatpush.msra.mxu0 0.0
          %264 = vmatpush.msra.mxu0 0.0
          %265 = vmatpush.msra.mxu0 0.0
          %266 = vmatpush.msra.mxu0 0.0
          %267 = vmatpush.msra.mxu0 0.0
          %268 = vmatpush.msra.mxu0 0.0
          %269 = vmatpush.msra.mxu0 0.0
          %270 = vmatpush.msra.mxu0 0.0
          %271 = vmatpush.msra.mxu0 0.0
          %272 = vmatpush.msra.mxu0 0.0
          %273 = vmatpush.msra.mxu0 0.0
          %274 = vmatpush.msra.mxu0 0.0
          %275 = vmatpush.msra.mxu0 0.0
          %276 = vmatpush.msra.mxu0 0.0
          %277 = vmatpush.msra.mxu0 %v258
          %278 = vmatmul.f32.gmra.mxu0 %v255
          %v279 = vpop.f32.mrf.mxu0
          %v280 = vadd.f32 %v246, %v279
          %281 = vdwg.mxu0
          %282 = vmatpush.msra.mxu0 0.0
          %283 = vmatpush.msra.mxu0 0.0
          %284 = vmatpush.msra.mxu0 0.0
          %285 = vmatpush.msra.mxu0 0.0
          %286 = vmatpush.msra.mxu0 0.0
          %287 = vmatpush.msra.mxu0 0.0
          %288 = vmatpush.msra.mxu0 0.0
          %289 = vmatpush.msra.mxu0 0.0
          %290 = vmatpush.msra.mxu0 0.0
          %291 = vmatpush.msra.mxu0 0.0
          %292 = vmatpush.msra.mxu0 0.0
          %293 = vmatpush.msra.mxu0 0.0
          %294 = vmatpush.msra.mxu0 0.0
          %295 = vmatpush.msra.mxu0 0.0
          %296 = vmatpush.msra.mxu0 0.0
          %297 = vmatpush.msra.mxu0 %v260
          %298 = vmatmul.f32.gmra.mxu0 %v255
          %v299 = vpop.f32.mrf.mxu0
          %v300 = vadd.f32 %v246, %v299
          %301 = vdwg.mxu0
          %v302 = vld [vmem:[#allocation2] sm:$0xf]
          %v305 = vrot.slane %v280, 4
          %v306 = vrot.slane %v300, 4
          %309 = vmatpush.xpose.msra.mxu0 0.0
          %310 = vmatpush.xpose.msra.mxu0 0.0
          %311 = vmatpush.xpose.msra.mxu0 0.0
          %312 = vmatpush.xpose.msra.mxu0 0.0
          %313 = vmatpush.xpose.msra.mxu0 0.0
          %314 = vmatpush.xpose.msra.mxu0 0.0
          %315 = vmatpush.xpose.msra.mxu0 0.0
          %316 = vmatpush.xpose.msra.mxu0 0.0
          %317 = vmatpush.xpose.msra.mxu0 0.0
          %318 = vmatpush.xpose.msra.mxu0 0.0
          %319 = vmatpush.xpose.msra.mxu0 0.0
          %320 = vmatpush.xpose.msra.mxu0 0.0
          %321 = vmatpush.xpose.msra.mxu0 0.0
          %322 = vmatpush.xpose.msra.mxu0 0.0
          %323 = vmatpush.xpose.msra.mxu0 0.0
          %324 = vmatpush.xpose.msra.mxu0 %v280
          %325 = vmatmul.f32.gmra.mxu0 %v305
          %v326 = vpop.f32.mrf.mxu0
          %v327 = vadd.f32 0.0, %v326
          %328 = vdwg.mxu0
          %329 = vmatpush.xpose.msra.mxu0 0.0
          %330 = vmatpush.xpose.msra.mxu0 0.0
          %331 = vmatpush.xpose.msra.mxu0 0.0
          %332 = vmatpush.xpose.msra.mxu0 0.0
          %333 = vmatpush.xpose.msra.mxu0 0.0
          %334 = vmatpush.xpose.msra.mxu0 0.0
          %335 = vmatpush.xpose.msra.mxu0 0.0
          %336 = vmatpush.xpose.msra.mxu0 0.0
          %337 = vmatpush.xpose.msra.mxu0 0.0
          %338 = vmatpush.xpose.msra.mxu0 0.0
          %339 = vmatpush.xpose.msra.mxu0 0.0
          %340 = vmatpush.xpose.msra.mxu0 0.0
          %341 = vmatpush.xpose.msra.mxu0 0.0
          %342 = vmatpush.xpose.msra.mxu0 0.0
          %343 = vmatpush.xpose.msra.mxu0 0.0
          %344 = vmatpush.xpose.msra.mxu0 %v300
          %345 = vmatmul.f32.gmra.mxu0 %v306
          %v346 = vpop.f32.mrf.mxu0
          %v347 = vadd.f32 %v327, %v346
          %348 = vdwg.mxu0
          %v349 = vadd.f32 %v302, %v347
          %350 = vst.msk [vmem:[#allocation2] sm:$0xf] %vm239, %v349
        $region44: #{tpu_custom_call.1} parent=39 // pred_fallthru
          _
        %p351 = scmp.eq.s32.totalorder %s24, 1
        // Predicated region
        $region45: #{tpu_custom_call.1} parent=39 // pred_check
          %p352 = pneg %p351
        $region46: #{tpu_custom_call.1} parent=39 // pred_check_branch
          %354 = sbr.rel (%p352) target = $region48
        $region47: #{tpu_custom_call.1} parent=39 // pred_region
          %v355 = vld [vmem:[#allocation2] sm:$0xf]
          %v356 = vmul.f32 %v355, 0.00390625
          %vm357 = vcmask 27648
          %v358 = vsel %vm357, %v356, -inf
          %359 = vmax.xlane.f32.xlu0 %v358
          %v360 = vpop.xlane.xlu0 %359
          %v361 = vsub.f32 %v356, %v360
          %v362 = vmul.f32 %v361, 1.442695
          %v363 = vpow.pop %v362
          %v364 = vsel %vm357, %v363, 0.0
          %365 = vadd.xlane.f32.xlu0 %v364
          %v366 = vpop.xlane.xlu0 %365
          %v367 = vrcp.pop %v366
          %v368 = vmul.f32 %v363, %v367
          %v369 = vld [vmem:[%s3] sm:$0xf]
          %v370 = vld [vmem:[%s4] sm:$0xf]
          %372 = vset.pattern.permute.xlu0 0
          %373 = vperm.xlu0 %372, %v370
          %v374 = vpop.permute.xlu0 %373
          %v376 = vld [vmem:[%s234] sm:$0xff]
          %378 = vst [vmem:[#allocation1] ss:$2 sm:$0xff] %v376
          %v379 = vld.sshfl [vmem:[#allocation1] sm:$0xff pattern:$0x75316420]
          %v380 = vld.sshfl [vmem:[#allocation1 + $0x8] sm:$0xff pattern:$0x75316420]
          %vm381 = vcmask 31744
          %v383 = vsel %vm381, %v368, 0
          %vm385 = vcmask 1043456
          %v386 = vsel %vm385, %v379, 0
          %v388 = vsel %vm385, %v380, 0
          %390 = vmatpush.msra.mxu0 0.0
          %391 = vmatpush.msra.mxu0 0.0
          %392 = vmatpush.msra.mxu0 0.0
          %393 = vmatpush.msra.mxu0 0.0
          %394 = vmatpush.msra.mxu0 0.0
          %395 = vmatpush.msra.mxu0 0.0
          %396 = vmatpush.msra.mxu0 0.0
          %397 = vmatpush.msra.mxu0 0.0
          %398 = vmatpush.msra.mxu0 0.0
          %399 = vmatpush.msra.mxu0 0.0
          %400 = vmatpush.msra.mxu0 0.0
          %401 = vmatpush.msra.mxu0 0.0
          %402 = vmatpush.msra.mxu0 0.0
          %403 = vmatpush.msra.mxu0 0.0
          %404 = vmatpush.msra.mxu0 0.0
          %405 = vmatpush.msra.mxu0 %v386
          %406 = vmatmul.f32.gmra.mxu0 %v383
          %v407 = vpop.f32.mrf.mxu0
          %v408 = vadd.f32 0.0, %v407
          %409 = vdwg.mxu0
          %410 = vmatpush.msra.mxu0 0.0
          %411 = vmatpush.msra.mxu0 0.0
          %412 = vmatpush.msra.mxu0 0.0
          %413 = vmatpush.msra.mxu0 0.0
          %414 = vmatpush.msra.mxu0 0.0
          %415 = vmatpush.msra.mxu0 0.0
          %416 = vmatpush.msra.mxu0 0.0
          %417 = vmatpush.msra.mxu0 0.0
          %418 = vmatpush.msra.mxu0 0.0
          %419 = vmatpush.msra.mxu0 0.0
          %420 = vmatpush.msra.mxu0 0.0
          %421 = vmatpush.msra.mxu0 0.0
          %422 = vmatpush.msra.mxu0 0.0
          %423 = vmatpush.msra.mxu0 0.0
          %424 = vmatpush.msra.mxu0 0.0
          %425 = vmatpush.msra.mxu0 %v388
          %426 = vmatmul.f32.gmra.mxu0 %v383
          %v427 = vpop.f32.mrf.mxu0
          %v428 = vadd.f32 0.0, %v427
          %429 = vdwg.mxu0
          %v431 = vsel %vm381, %v369, 0
          %v434 = vsel %vm385, %v408, 0
          %v437 = vsel %vm385, %v428, 0
          %439 = vmatpush.msra.mxu0 0.0
          %440 = vmatpush.msra.mxu0 0.0
          %441 = vmatpush.msra.mxu0 0.0
          %442 = vmatpush.msra.mxu0 0.0
          %443 = vmatpush.msra.mxu0 0.0
          %444 = vmatpush.msra.mxu0 0.0
          %445 = vmatpush.msra.mxu0 0.0
          %446 = vmatpush.msra.mxu0 0.0
          %447 = vmatpush.msra.mxu0 0.0
          %448 = vmatpush.msra.mxu0 0.0
          %449 = vmatpush.msra.mxu0 0.0
          %450 = vmatpush.msra.mxu0 0.0
          %451 = vmatpush.msra.mxu0 0.0
          %452 = vmatpush.msra.mxu0 0.0
          %453 = vmatpush.msra.mxu0 0.0
          %454 = vmatpush.msra.mxu0 %v434
          %455 = vmatmul.f32.gmra.mxu0 %v431
          %v456 = vpop.f32.mrf.mxu0
          %v457 = vadd.f32 %v374, %v456
          %458 = vdwg.mxu0
          %459 = vmatpush.msra.mxu0 0.0
          %460 = vmatpush.msra.mxu0 0.0
          %461 = vmatpush.msra.mxu0 0.0
          %462 = vmatpush.msra.mxu0 0.0
          %463 = vmatpush.msra.mxu0 0.0
          %464 = vmatpush.msra.mxu0 0.0
          %465 = vmatpush.msra.mxu0 0.0
          %466 = vmatpush.msra.mxu0 0.0
          %467 = vmatpush.msra.mxu0 0.0
          %468 = vmatpush.msra.mxu0 0.0
          %469 = vmatpush.msra.mxu0 0.0
          %470 = vmatpush.msra.mxu0 0.0
          %471 = vmatpush.msra.mxu0 0.0
          %472 = vmatpush.msra.mxu0 0.0
          %473 = vmatpush.msra.mxu0 0.0
          %474 = vmatpush.msra.mxu0 %v437
          %475 = vmatmul.f32.gmra.mxu0 %v431
          %v476 = vpop.f32.mrf.mxu0
          %v477 = vadd.f32 %v374, %v476
          %478 = vdwg.mxu0
          %v479 = vmax.f32 %v457, 0.0
          %v480 = vmax.f32 %v477, 0.0
          %v483 = vrot.slane %v480, 4
          %v484 = vsel %vm385, %v479, %v483
          %486 = vst [vmem:[%s229] sm:$0xff] %v484
        $region48: #{tpu_custom_call.1} parent=39 // pred_fallthru
          _
        %s487 = sand.u32 %s149, 1
        %s488 = scalar_lea.sflag [#allocation4], %s487
        %s489 = sand.u32 %s149, 1
        %s490 = smul.addr %s489, 8
        %s491 = scalar_lea.vmem [#allocation3], %s490
        // Predicated region
        $region49: #{tpu_custom_call.1} parent=39 // pred_check
          %p492 = pneg %p159
        $region50: #{tpu_custom_call.1} parent=39 // pred_check_branch
          %494 = sbr.rel (%p492) target = $region52
        $region51: #{tpu_custom_call.1} parent=39 // pred_region
          %496 = vsyncadd %s488, 0
          %s497 = smul.addr %s23, 2
          %s498 = smul.addr %s497, 4
          %s499 = scalar_lea.hbm %s5, %s498
          %s501 = sshll.u32 %s491, 4
          %s502 = int_to_ptr.vmem [resolvable:$true] %s501
          %s503 = sshll.u32 %s499, 4
          %s504 = int_to_ptr.hbm [resolvable:$true] %s503
          %506 = dma.vmem_to_hbm [thread:$0]  %s502, 128, %s504, %s488
        $region52: #{tpu_custom_call.1} parent=39 // pred_fallthru
          _
      $region40: #{tpu_custom_call.1} parent=5 // pred_fallthru
        _
      %p507 = scmp.le.s32.totalorder 2, %s14
      // Predicated region
      $region53: #{tpu_custom_call.1} parent=5 // pred_check
        %p508 = pneg %p507
      $region54: #{tpu_custom_call.1} parent=5 // pred_check_branch
        %510 = sbr.rel (%p508) target = $region56
      $region55: #{tpu_custom_call.1} parent=5 // pred_region
        %s511 = ssub.s32 %s14, 2
        // Predicated region
        $region57: #{tpu_custom_call.1} parent=55 // pred_check
          %p512 = pneg %p165
        $region58: #{tpu_custom_call.1} parent=55 // pred_check_branch
          %514 = sbr.rel (%p512) target = $region60
        $region59: #{tpu_custom_call.1} parent=55 // pred_region
          %s515 = sand.u32 %s150, 1
          %s516 = scalar_lea.sflag [#allocation4], %s515
          %s517 = sand.u32 %s150, 1
          %s518 = smul.addr %s517, 8
          %s519 = scalar_lea.vmem [#allocation3], %s518
          %521 = dma.done %s516, 128
        $region60: #{tpu_custom_call.1} parent=55 // pred_fallthru
          _
      $region56: #{tpu_custom_call.1} parent=5 // pred_fallthru
        _
    $region6: #{tpu_custom_call.1} parent=1 // loop_footer
      %s18 = sadd.s32 1, %s14
    $region7: #{tpu_custom_call.1} parent=1 // loop_footer_branch
      %13 = sbr.rel target = $region3
    $region8: #{tpu_custom_call.1} parent=1 // loop_exit
      _
    %522 = vsyncpa [#allocation4], 1
    %s523 = scalar_lea.sflag [#allocation4], 1
    %524 = vsyncpa %s523, 1

</llo_original>
